<compile_context>
chip_gen: v7x
topology: tpu7x:2x2x1
jax: 0.10.0
libtpu: 0.0.40
codegen_flags: <defaults>
</compile_context>

<pallas_src>
import functools

import jax
import jax.numpy as jnp
from jax.experimental import pallas as pl
from jax.experimental.pallas import tpu as pltpu

_LANE = 128
_SUBLANE = 8
# Per-buffer budget for the (double-buffered) feature block.  2 buffers plus
# the tiny mask/inv/out/scratch buffers stay well inside the 48 MiB scoped
# VMEM limit below (and inside v7x's 64 MiB physical VMEM).
_MAX_FEAT_BLOCK_BYTES = 16 * 1024 * 1024
_VMEM_LIMIT_BYTES = 48 * 1024 * 1024


def _round_up(x: int, m: int) -> int:
    return ((x + m - 1) // m) * m


def _pick_tile(extent: int, cap: int, *, min_tiles: int = 1, unit: int = _LANE) -> int:
    """Largest `unit`-multiple tile <= cap that minimizes padding of `extent`
    while yielding at least `min_tiles` tiles (when possible)."""
    ext_u = _round_up(extent, unit)
    cap = max(unit, (cap // unit) * unit)
    best_key, best_t = None, None
    t = unit
    while t <= min(cap, ext_u):
        padded = _round_up(extent, t)
        if padded // t >= min_tiles:
            key = (padded, -t)
            if best_key is None or key < best_key:
                best_key, best_t = key, t
        t += unit
    if best_t is None:  # cannot honor min_tiles; fall back to one full tile
        best_t = min(cap, ext_u)
    return best_t


def _choose_tiles(B: int, S: int, H: int, itemsize: int):
    tb = _SUBLANE
    B_pad = _round_up(B, tb)
    b_tiles = B_pad // tb

    H128 = _round_up(H, _LANE)
    S8 = _round_up(S, _SUBLANE)

    # Hidden tile: prefer the full (padded) hidden dim (contiguous DMA, H axis
    # collapsed); split into >=2 tiles when batch alone can't feed 2 TCs (v7x).
    ts_min = min(_LANE, S8)
    th_cap = max(_LANE, _MAX_FEAT_BLOCK_BYTES // (tb * ts_min * itemsize))
    min_h_tiles = 2 if b_tiles < 2 else 1
    if H128 <= th_cap and (min_h_tiles == 1 or H128 < 2 * _LANE):
        th = H128
    else:
        th = _pick_tile(H, min(th_cap, H128), min_tiles=min_h_tiles)
    H_pad = _round_up(H128, th)

    # Sequence (reduction) tile: single step if it fits, else as large as the
    # VMEM budget allows (multiple of 128, minimal padding).
    if tb * S8 * th * itemsize <= _MAX_FEAT_BLOCK_BYTES:
        ts = S8
        S_pad = S8
    else:
        ts_cap = _MAX_FEAT_BLOCK_BYTES // (tb * th * itemsize)
        ts = _pick_tile(S, ts_cap)
        S_pad = _round_up(S, ts)

    return tb, ts, th, B_pad, S_pad, H_pad


def _masked_mean_pool_kernel(feat_ref, mask_ref, inv_ref, out_ref, acc_ref):
    # feat: [tb, ts, th]   mask: [tb, 1, ts]   inv: [tb, 1, 1]
    # out:  [tb, 1, th]    acc:  [tb, 1, th] f32
    s = pl.program_id(2)

    @pl.when(s == 0)
    def _init():
        acc_ref[...] = jnp.zeros_like(acc_ref)

    # Masked partial sum over this sequence tile on the MXU:
    #   [tb, 1, ts] @ [tb, ts, th] -> [tb, 1, th], accumulated in f32.
    acc_ref[...] += jnp.einsum(
        "bks,bsh->bkh", mask_ref[...], feat_ref[...],
        preferred_element_type=jnp.float32)

    @pl.when(s == pl.num_programs(2) - 1)
    def _finalize():
        out_ref[...] = (acc_ref[...] * inv_ref[...]).astype(out_ref.dtype)


def _mean_pool_kernel(feat_ref, out_ref, acc_ref, *, inv_len):
    # feat: [tb, ts, th]   out/acc: [tb, th]
    s = pl.program_id(2)

    @pl.when(s == 0)
    def _init():
        acc_ref[...] = jnp.zeros_like(acc_ref)

    acc_ref[...] += jnp.sum(feat_ref[...], axis=1, dtype=jnp.float32)

    @pl.when(s == pl.num_programs(2) - 1)
    def _finalize():
        out_ref[...] = (acc_ref[...] * inv_len).astype(out_ref.dtype)


@jax.jit
def mean_pooling(features, input_mask=None):
    """features: [B, S, H]; input_mask: optional [B, S]. Returns [B, H]."""
    B, S, H = features.shape
    itemsize = jnp.dtype(features.dtype).itemsize
    tb, ts, th, B_pad, S_pad, H_pad = _choose_tiles(B, S, H, itemsize)

    feat = features
    if (B_pad, S_pad, H_pad) != (B, S, H):
        feat = jnp.pad(feat, ((0, B_pad - B), (0, S_pad - S), (0, H_pad - H)))

    grid = (B_pad // tb, H_pad // th, S_pad // ts)
    cparams = pltpu.CompilerParams(
        dimension_semantics=("parallel", "parallel", "arbitrary"),
        vmem_limit_bytes=_VMEM_LIMIT_BYTES)

    if input_mask is None:
        # Fast path: no mask stream, no count; scale by 1/S at finalize.
        cost = pl.CostEstimate(
            flops=B * S * H, transcendentals=0,
            bytes_accessed=feat.size * itemsize + B_pad * H_pad * itemsize)
        out_pad = pl.pallas_call(
            functools.partial(_mean_pool_kernel, inv_len=1.0 / S),
            out_shape=jax.ShapeDtypeStruct((B_pad, H_pad), features.dtype),
            grid_spec=pltpu.PrefetchScalarGridSpec(
                num_scalar_prefetch=0,
                grid=grid,
                in_specs=[pl.BlockSpec((tb, ts, th), lambda b, h, s: (b, s, h))],
                out_specs=pl.BlockSpec((tb, th), lambda b, h, s: (b, h)),
                scratch_shapes=[pltpu.VMEM((tb, th), jnp.float32)],
            ),
            compiler_params=cparams,
            cost_estimate=cost,
        )(feat)
        return out_pad[:B, :H]

    # Masked path.
    mask = input_mask.astype(features.dtype)
    if (B_pad, S_pad) != (B, S):
        mask = jnp.pad(mask, ((0, B_pad - B), (0, S_pad - S)))
    # Lane-dense [B, 1, S] layout for the in-kernel MXU reduction.
    mask3 = mask[:, None, :]
    # Hoisted token count (cheap XLA reduction, reused across every H tile).
    # No clamp: all-zero mask rows give NaN, matching the PyTorch module;
    # zero-padded batch rows also give NaN but are sliced off below.
    inv_cnt = (1.0 / jnp.sum(mask.astype(jnp.float32), axis=1))[:, None, None]

    cost = pl.CostEstimate(
        flops=2 * B * S * H, transcendentals=0,
        bytes_accessed=(feat.size * itemsize + mask3.size * itemsize
                        + inv_cnt.size * 4 + B_pad * H_pad * itemsize))
    out_pad = pl.pallas_call(
        _masked_mean_pool_kernel,
        out_shape=jax.ShapeDtypeStruct((B_pad, 1, H_pad), features.dtype),
        grid_spec=pltpu.PrefetchScalarGridSpec(
            num_scalar_prefetch=0,
            grid=grid,
            in_specs=[
                pl.BlockSpec((tb, ts, th), lambda b, h, s: (b, s, h)),
                pl.BlockSpec((tb, 1, ts), lambda b, h, s: (b, 0, s)),
                pl.BlockSpec((tb, 1, 1), lambda b, h, s: (b, 0, 0)),
            ],
            out_specs=pl.BlockSpec((tb, 1, th), lambda b, h, s: (b, 0, h)),
            scratch_shapes=[pltpu.VMEM((tb, 1, th), jnp.float32)],
        ),
        compiler_params=cparams,
        cost_estimate=cost,
    )(feat, mask3, inv_cnt)
    return out_pad[:B, 0, :H]


if __name__ == "__main__":
    # Small config consistent with the module: sentence-level pooling.
    batch, seq, hidden = 2, 8, 32

    key = jax.random.PRNGKey(0)
    k_f, _ = jax.random.split(key)
    features = jax.random.normal(k_f, (batch, seq, hidden), dtype=jnp.float32)

    # Deterministic padding-style mask: sequence lengths [8, 5].
    lengths = jnp.array([8, 5], dtype=jnp.int32)
    input_mask = (jnp.arange(seq)[None, :] < lengths[:, None]).astype(jnp.float32)

    out_masked = jax.block_until_ready(mean_pooling(features, input_mask))
    out_plain = jax.block_until_ready(mean_pooling(features))

    # Plain-JAX references (same math as the PyTorch module).
    ref_masked = jnp.sum(features * input_mask[:, :, None], axis=1) / jnp.sum(
        input_mask, axis=1, keepdims=True)
    ref_plain = jnp.mean(features, axis=1)

    assert out_masked.shape == (batch, hidden)
    assert out_plain.shape == (batch, hidden)
    assert jnp.allclose(out_masked, ref_masked, atol=1e-5, rtol=1e-5)
    assert jnp.allclose(out_plain, ref_plain, atol=1e-5, rtol=1e-5)

    print("KERNEL_OK")
</pallas_src>

<mosaic_0001>
module attributes {stable_mosaic.version = 11 : i64} {
  func.func @_masked_mean_pool_kernel(%arg0: i32, %arg1: i32, %arg2: i32, %arg3: memref<8x8x128xf32, #tpu.memory_space<vmem>>, %arg4: memref<8x1x8xf32, #tpu.memory_space<vmem>>, %arg5: memref<8x1x1xf32, #tpu.memory_space<vmem>>, %arg6: memref<8x1x128xf32, #tpu.memory_space<vmem>>, %arg7: memref<8x1x128xf32, #tpu.memory_space<vmem>>) attributes {dimension_semantics = [#tpu.dimension_semantics<parallel>, #tpu.dimension_semantics<parallel>, #tpu.dimension_semantics<arbitrary>], iteration_bounds = array<i64: 1, 1, 1>, scalar_prefetch = 0 : i64, scratch_operands = 1 : i64, tpu.core_type = #tpu.core_type<tc>, window_params = [{transform_indices = @transform_0, window_bounds = array<i64: 8, 8, 128>}, {transform_indices = @transform_1, window_bounds = array<i64: 8, 1, 8>}, {transform_indices = @transform_2, window_bounds = array<i64: 8, 1, 1>}, {transform_indices = @transform_3, window_bounds = array<i64: 8, 1, 128>}]} {
    %c0_i32 = arith.constant 0 : i32
    %0 = arith.cmpi eq, %arg2, %c0_i32 : i32
    %1 = arith.extui %0 : i1 to i32
    %c0_i32_0 = arith.constant 0 : i32
    %2 = arith.cmpi ne, %1, %c0_i32_0 : i32
    scf.if %2 {
      %cst_14 = arith.constant 0.000000e+00 : f32
      %12 = vector.broadcast %cst_14 : f32 to vector<8x1x128xf32>
      %c0_15 = arith.constant 0 : index
      %c0_16 = arith.constant 0 : index
      %c0_17 = arith.constant 0 : index
      %13 = vector.load %arg7[%c0_15, %c0_16, %c0_17] : memref<8x1x128xf32, #tpu.memory_space<vmem>>, vector<8x1x128xf32>
      tpu.vector_store %arg7[%c0_15, %c0_16, %c0_17], %12 {strides = array<i32>} : memref<8x1x128xf32, #tpu.memory_space<vmem>>, vector<8x1x128xf32>,
    } else {
    }
    %c0 = arith.constant 0 : index
    %c0_1 = arith.constant 0 : index
    %c0_2 = arith.constant 0 : index
    %3 = vector.load %arg7[%c0, %c0_1, %c0_2] : memref<8x1x128xf32, #tpu.memory_space<vmem>>, vector<8x1x128xf32>
    %c0_3 = arith.constant 0 : index
    %c0_4 = arith.constant 0 : index
    %c0_5 = arith.constant 0 : index
    %4 = vector.load %arg4[%c0_3, %c0_4, %c0_5] : memref<8x1x8xf32, #tpu.memory_space<vmem>>, vector<8x1x8xf32>
    %c0_6 = arith.constant 0 : index
    %c0_7 = arith.constant 0 : index
    %c0_8 = arith.constant 0 : index
    %5 = vector.load %arg3[%c0_6, %c0_7, %c0_8] : memref<8x8x128xf32, #tpu.memory_space<vmem>>, vector<8x8x128xf32>
    "tpu.trace_start"() <{level = 10 : i32, message = "bks,bsh->bkh"}> : () -> ()
    %cst = arith.constant dense<0.000000e+00> : vector<8x1x128xf32>
    %6 = tpu.matmul %4, %5, %cst {dimension_numbers = #tpu.dot_dimension_numbers<[2], [1], [1], [2], [0, 0, 0, 1, 1, 2], [0], [0]>} : vector<8x1x8xf32>, vector<8x8x128xf32>, vector<8x1x128xf32> -> vector<8x1x128xf32>
    "tpu.trace_stop"() : () -> ()
    %7 = arith.addf %3, %6 : vector<8x1x128xf32>
    %c0_9 = arith.constant 0 : index
    %c0_10 = arith.constant 0 : index
    %c0_11 = arith.constant 0 : index
    %8 = vector.load %arg7[%c0_9, %c0_10, %c0_11] : memref<8x1x128xf32, #tpu.memory_space<vmem>>, vector<8x1x128xf32>
    tpu.vector_store %arg7[%c0_9, %c0_10, %c0_11], %7 {strides = array<i32>} : memref<8x1x128xf32, #tpu.memory_space<vmem>>, vector<8x1x128xf32>,
    %c0_i32_12 = arith.constant 0 : i32
    %9 = arith.cmpi eq, %arg2, %c0_i32_12 : i32
    %10 = arith.extui %9 : i1 to i32
    %c0_i32_13 = arith.constant 0 : i32
    %11 = arith.cmpi ne, %10, %c0_i32_13 : i32
    scf.if %11 {
      %c0_14 = arith.constant 0 : index
      %c0_15 = arith.constant 0 : index
      %c0_16 = arith.constant 0 : index
      %12 = vector.load %arg7[%c0_14, %c0_15, %c0_16] : memref<8x1x128xf32, #tpu.memory_space<vmem>>, vector<8x1x128xf32>
      %c0_17 = arith.constant 0 : index
      %c0_18 = arith.constant 0 : index
      %c0_19 = arith.constant 0 : index
      %13 = vector.load %arg5[%c0_17, %c0_18, %c0_19] : memref<8x1x1xf32, #tpu.memory_space<vmem>>, vector<8x1x1xf32>
      %14 = vector.broadcast %13 : vector<8x1x1xf32> to vector<8x1x128xf32>
      %15 = arith.mulf %12, %14 : vector<8x1x128xf32>
      %c0_20 = arith.constant 0 : index
      %c0_21 = arith.constant 0 : index
      %c0_22 = arith.constant 0 : index
      %16 = vector.load %arg6[%c0_20, %c0_21, %c0_22] : memref<8x1x128xf32, #tpu.memory_space<vmem>>, vector<8x1x128xf32>
      tpu.vector_store %arg6[%c0_20, %c0_21, %c0_22], %15 {strides = array<i32>} : memref<8x1x128xf32, #tpu.memory_space<vmem>>, vector<8x1x128xf32>,
    } else {
    }
    return
  }
  func.func @transform_0(%arg0: i32, %arg1: i32, %arg2: i32) -> (i32, i32, i32) {
    %c0_i32 = arith.constant 0 : i32
    return %arg0, %arg2, %arg1 : i32, i32, i32
  }
  func.func @transform_1(%arg0: i32, %arg1: i32, %arg2: i32) -> (i32, i32, i32) {
    %c0_i32 = arith.constant 0 : i32
    %c0_i32_0 = arith.constant 0 : i32
    return %arg0, %c0_i32, %arg2 : i32, i32, i32
  }
  func.func @transform_2(%arg0: i32, %arg1: i32, %arg2: i32) -> (i32, i32, i32) {
    %c0_i32 = arith.constant 0 : i32
    %c0_i32_0 = arith.constant 0 : i32
    %c0_i32_1 = arith.constant 0 : i32
    return %arg0, %c0_i32, %c0_i32_0 : i32, i32, i32
  }
  func.func @transform_3(%arg0: i32, %arg1: i32, %arg2: i32) -> (i32, i32, i32) {
    %c0_i32 = arith.constant 0 : i32
    %c0_i32_0 = arith.constant 0 : i32
    return %arg0, %c0_i32, %arg1 : i32, i32, i32
  }
}

</mosaic_0001>

<llo_original>
// kernel: mean_pooling.1
$region0: #{mean_pooling.1}
  #allocation0 [shape = 'u32[]', space=smem, size = 0x4, offset = 0x4, fixed_abs, tag = 'smem constant byte address 0x4 - core index']
  #allocation1 [shape = 'u32[144,128]{1,0:T(1,128)}', space=vmem, size = 0x12000, scoped, tag = 'internal scratch']
  #allocation2 [shape = 'f32[8,1,128]{2,1,0:T(1,128)}', space=vmem, size = 0x1000, scoped, tag = 'scratch operand']
  %s0 = inlined_call_operand.vmem [shape: f32[8,8,128], index: 0, kind: input, shape index: {}]
  %s1 = inlined_call_operand.vmem [shape: f32[8,1,8], index: 1, kind: input, shape index: {}]
  %s2 = inlined_call_operand.vmem [shape: f32[8,1,1], index: 2, kind: input, shape index: {}]
  %s3 = inlined_call_operand.vmem [shape: f32[8,1,128], index: 3, kind: output, shape index: {}]
  %s4 = sld [smem:[#allocation0]]
  $region30: #{mean_pooling.1} parent=0
    _
  %s6 = ssub.s32 1, %s4
  %s7 = scalar_select 0, %s6, %s4
  // Predicated region
  $region2: #{mean_pooling.1} parent=0 // pred_check
    _
  $region3: #{mean_pooling.1} parent=0 // pred_check_branch
    %9 = sbr.rel (0) target = $region5
  $region4: #{mean_pooling.1} parent=0 // pred_region
    _
  $region5: #{mean_pooling.1} parent=0 // pred_fallthru
    _
  // Predicated region
  $region6: #{mean_pooling.1} parent=0 // pred_check
    _
  $region7: #{mean_pooling.1} parent=0 // pred_check_branch
    %11 = sbr.rel (0) target = $region9
  $region8: #{mean_pooling.1} parent=0 // pred_region
    _
  $region9: #{mean_pooling.1} parent=0 // pred_fallthru
    _
  // Predicated region
  $region10: #{mean_pooling.1} parent=0 // pred_check
    _
  $region11: #{mean_pooling.1} parent=0 // pred_check_branch
    %13 = sbr.rel (0) target = $region13
  $region12: #{mean_pooling.1} parent=0 // pred_region
    _
  $region13: #{mean_pooling.1} parent=0 // pred_fallthru
    _
  %p14 = scmp.eq.s32.totalorder 0, 0
  // Predicated region
  $region14: #{mean_pooling.1} parent=0 // pred_check
    %p15 = pneg %p14
  $region15: #{mean_pooling.1} parent=0 // pred_check_branch
    %17 = sbr.rel (%p15) target = $region17
  $region16: #{mean_pooling.1} parent=0 // pred_region
    %18 = vst [vmem:[#allocation2] sm:$0x1] 0.0
    %19 = vst [vmem:[#allocation2 + $0x1] sm:$0x1] 0.0
    %20 = vst [vmem:[#allocation2 + $0x2] sm:$0x1] 0.0
    %21 = vst [vmem:[#allocation2 + $0x3] sm:$0x1] 0.0
    %22 = vst [vmem:[#allocation2 + $0x4] sm:$0x1] 0.0
    %23 = vst [vmem:[#allocation2 + $0x5] sm:$0x1] 0.0
    %24 = vst [vmem:[#allocation2 + $0x6] sm:$0x1] 0.0
    %25 = vst [vmem:[#allocation2 + $0x7] sm:$0x1] 0.0
  $region17: #{mean_pooling.1} parent=0 // pred_fallthru
    _
  %v26 = vld [vmem:[#allocation2] sm:$0x1]
  %v27 = vld [vmem:[#allocation2 + $0x1] sm:$0x1]
  %v28 = vld [vmem:[#allocation2 + $0x2] sm:$0x1]
  %v29 = vld [vmem:[#allocation2 + $0x3] sm:$0x1]
  %v30 = vld [vmem:[#allocation2 + $0x4] sm:$0x1]
  %v31 = vld [vmem:[#allocation2 + $0x5] sm:$0x1]
  %v32 = vld [vmem:[#allocation2 + $0x6] sm:$0x1]
  %v33 = vld [vmem:[#allocation2 + $0x7] sm:$0x1]
  %v34 = vld [vmem:[%s1] sm:$0x1]
  %v35 = vld [vmem:[%s1 + $0x1] sm:$0x1]
  %v36 = vld [vmem:[%s1 + $0x2] sm:$0x1]
  %v37 = vld [vmem:[%s1 + $0x3] sm:$0x1]
  %v38 = vld [vmem:[%s1 + $0x4] sm:$0x1]
  %v39 = vld [vmem:[%s1 + $0x5] sm:$0x1]
  %v40 = vld [vmem:[%s1 + $0x6] sm:$0x1]
  %v41 = vld [vmem:[%s1 + $0x7] sm:$0x1]
  %v42 = vld [vmem:[%s0] sm:$0xff]
  %v43 = vld [vmem:[%s0 + $0x8] sm:$0xff]
  %v44 = vld [vmem:[%s0 + $0x10] sm:$0xff]
  %v45 = vld [vmem:[%s0 + $0x18] sm:$0xff]
  %v46 = vld [vmem:[%s0 + $0x20] sm:$0xff]
  %v47 = vld [vmem:[%s0 + $0x28] sm:$0xff]
  %v48 = vld [vmem:[%s0 + $0x30] sm:$0xff]
  %v49 = vld [vmem:[%s0 + $0x38] sm:$0xff]
  %vm50 = vcmask 64512
  %v52 = vsel %vm50, %v34, 0
  %54 = vmatprep.subr.mxu0 0.0
  %55 = vmatpush1.msra.mxu0 %v42
  %56 = vmatprep.subr.mxu0 0.0
  %57 = vmatpush1.msra.mxu0 0.0
  %58 = vmatprep.subr.mxu0 0.0
  %59 = vmatpush1.msra.mxu0 0.0
  %60 = vmatprep.subr.mxu0 0.0
  %61 = vmatpush1.msra.mxu0 0.0
  %62 = vmatprep.subr.mxu0 0.0
  %63 = vmatpush1.msra.mxu0 0.0
  %64 = vmatprep.subr.mxu0 0.0
  %65 = vmatpush1.msra.mxu0 0.0
  %66 = vmatprep.subr.mxu0 0.0
  %67 = vmatpush1.msra.mxu0 0.0
  %68 = vmatprep.subr.mxu0 0.0
  %69 = vmatpush1.msra.mxu0 0.0
  %70 = vmatprep.subr.mxu0 0.0
  %71 = vmatpush1.msra.mxu0 0.0
  %72 = vmatprep.subr.mxu0 0.0
  %73 = vmatpush1.msra.mxu0 0.0
  %74 = vmatprep.subr.mxu0 0.0
  %75 = vmatpush1.msra.mxu0 0.0
  %76 = vmatprep.subr.mxu0 0.0
  %77 = vmatpush1.msra.mxu0 0.0
  %78 = vmatprep.subr.mxu0 0.0
  %79 = vmatpush1.msra.mxu0 0.0
  %80 = vmatprep.subr.mxu0 0.0
  %81 = vmatpush1.msra.mxu0 0.0
  %82 = vmatprep.subr.mxu0 0.0
  %83 = vmatpush1.msra.mxu0 0.0
  %84 = vmatprep.subr.mxu0 0.0
  %85 = vmatpush1.msra.mxu0 0.0
  %86 = vmatprep.subr.mxu0 0.0
  %87 = vmatpush1.msra.mxu0 0.0
  %88 = vmatprep.subr.mxu0 0.0
  %89 = vmatpush1.msra.mxu0 0.0
  %90 = vmatprep.subr.mxu0 0.0
  %91 = vmatpush1.msra.mxu0 0.0
  %92 = vmatprep.subr.mxu0 0.0
  %93 = vmatpush1.msra.mxu0 0.0
  %94 = vmatprep.subr.mxu0 0.0
  %95 = vmatpush1.msra.mxu0 0.0
  %96 = vmatprep.subr.mxu0 0.0
  %97 = vmatpush1.msra.mxu0 0.0
  %98 = vmatprep.subr.mxu0 0.0
  %99 = vmatpush1.msra.mxu0 0.0
  %100 = vmatprep.subr.mxu0 0.0
  %101 = vmatpush1.msra.mxu0 0.0
  %102 = vmatprep.subr.mxu0 0.0
  %103 = vmatpush1.msra.mxu0 0.0
  %104 = vmatprep.subr.mxu0 0.0
  %105 = vmatpush1.msra.mxu0 0.0
  %106 = vmatprep.subr.mxu0 0.0
  %107 = vmatpush1.msra.mxu0 0.0
  %108 = vmatprep.subr.mxu0 0.0
  %109 = vmatpush1.msra.mxu0 0.0
  %110 = vmatprep.subr.mxu0 0.0
  %111 = vmatpush1.msra.mxu0 0.0
  %112 = vmatprep.subr.mxu0 0.0
  %113 = vmatpush1.msra.mxu0 0.0
  %114 = vmatprep.subr.mxu0 0.0
  %115 = vmatpush1.msra.mxu0 0.0
  %116 = vmatprep.subr.mxu0 0.0
  %117 = vmatpush1.msra.mxu0 0.0
  %118 = vmatprep.mubr.f32.mxu0 0.0
  %119 = vmatmul.mubr.f32.gmra.mrb[0].mxu0 %v52
  %v120 = vpop.f32.mrb[0].mxu0
  %v121 = vadd.f32 0.0, %v120
  %v122 = vpop.f32.mrb[0].mxu0
  %123 = vdwg.mxu0
  %v125 = vsel %vm50, %v35, 0
  %127 = vmatprep.subr.mxu0 0.0
  %128 = vmatpush1.msra.mxu0 %v43
  %129 = vmatprep.subr.mxu0 0.0
  %130 = vmatpush1.msra.mxu0 0.0
  %131 = vmatprep.subr.mxu0 0.0
  %132 = vmatpush1.msra.mxu0 0.0
  %133 = vmatprep.subr.mxu0 0.0
  %134 = vmatpush1.msra.mxu0 0.0
  %135 = vmatprep.subr.mxu0 0.0
  %136 = vmatpush1.msra.mxu0 0.0
  %137 = vmatprep.subr.mxu0 0.0
  %138 = vmatpush1.msra.mxu0 0.0
  %139 = vmatprep.subr.mxu0 0.0
  %140 = vmatpush1.msra.mxu0 0.0
  %141 = vmatprep.subr.mxu0 0.0
  %142 = vmatpush1.msra.mxu0 0.0
  %143 = vmatprep.subr.mxu0 0.0
  %144 = vmatpush1.msra.mxu0 0.0
  %145 = vmatprep.subr.mxu0 0.0
  %146 = vmatpush1.msra.mxu0 0.0
  %147 = vmatprep.subr.mxu0 0.0
  %148 = vmatpush1.msra.mxu0 0.0
  %149 = vmatprep.subr.mxu0 0.0
  %150 = vmatpush1.msra.mxu0 0.0
  %151 = vmatprep.subr.mxu0 0.0
  %152 = vmatpush1.msra.mxu0 0.0
  %153 = vmatprep.subr.mxu0 0.0
  %154 = vmatpush1.msra.mxu0 0.0
  %155 = vmatprep.subr.mxu0 0.0
  %156 = vmatpush1.msra.mxu0 0.0
  %157 = vmatprep.subr.mxu0 0.0
  %158 = vmatpush1.msra.mxu0 0.0
  %159 = vmatprep.subr.mxu0 0.0
  %160 = vmatpush1.msra.mxu0 0.0
  %161 = vmatprep.subr.mxu0 0.0
  %162 = vmatpush1.msra.mxu0 0.0
  %163 = vmatprep.subr.mxu0 0.0
  %164 = vmatpush1.msra.mxu0 0.0
  %165 = vmatprep.subr.mxu0 0.0
  %166 = vmatpush1.msra.mxu0 0.0
  %167 = vmatprep.subr.mxu0 0.0
  %168 = vmatpush1.msra.mxu0 0.0
  %169 = vmatprep.subr.mxu0 0.0
  %170 = vmatpush1.msra.mxu0 0.0
  %171 = vmatprep.subr.mxu0 0.0
  %172 = vmatpush1.msra.mxu0 0.0
  %173 = vmatprep.subr.mxu0 0.0
  %174 = vmatpush1.msra.mxu0 0.0
  %175 = vmatprep.subr.mxu0 0.0
  %176 = vmatpush1.msra.mxu0 0.0
  %177 = vmatprep.subr.mxu0 0.0
  %178 = vmatpush1.msra.mxu0 0.0
  %179 = vmatprep.subr.mxu0 0.0
  %180 = vmatpush1.msra.mxu0 0.0
  %181 = vmatprep.subr.mxu0 0.0
  %182 = vmatpush1.msra.mxu0 0.0
  %183 = vmatprep.subr.mxu0 0.0
  %184 = vmatpush1.msra.mxu0 0.0
  %185 = vmatprep.subr.mxu0 0.0
  %186 = vmatpush1.msra.mxu0 0.0
  %187 = vmatprep.subr.mxu0 0.0
  %188 = vmatpush1.msra.mxu0 0.0
  %189 = vmatprep.subr.mxu0 0.0
  %190 = vmatpush1.msra.mxu0 0.0
  %191 = vmatprep.mubr.f32.mxu0 0.0
  %192 = vmatmul.mubr.f32.gmra.mrb[0].mxu0 %v125
  %v193 = vpop.f32.mrb[0].mxu0
  %v194 = vadd.f32 0.0, %v193
  %v195 = vpop.f32.mrb[0].mxu0
  %196 = vdwg.mxu0
  %v198 = vsel %vm50, %v36, 0
  %200 = vmatprep.subr.mxu0 0.0
  %201 = vmatpush1.msra.mxu0 %v44
  %202 = vmatprep.subr.mxu0 0.0
  %203 = vmatpush1.msra.mxu0 0.0
  %204 = vmatprep.subr.mxu0 0.0
  %205 = vmatpush1.msra.mxu0 0.0
  %206 = vmatprep.subr.mxu0 0.0
  %207 = vmatpush1.msra.mxu0 0.0
  %208 = vmatprep.subr.mxu0 0.0
  %209 = vmatpush1.msra.mxu0 0.0
  %210 = vmatprep.subr.mxu0 0.0
  %211 = vmatpush1.msra.mxu0 0.0
  %212 = vmatprep.subr.mxu0 0.0
  %213 = vmatpush1.msra.mxu0 0.0
  %214 = vmatprep.subr.mxu0 0.0
  %215 = vmatpush1.msra.mxu0 0.0
  %216 = vmatprep.subr.mxu0 0.0
  %217 = vmatpush1.msra.mxu0 0.0
  %218 = vmatprep.subr.mxu0 0.0
  %219 = vmatpush1.msra.mxu0 0.0
  %220 = vmatprep.subr.mxu0 0.0
  %221 = vmatpush1.msra.mxu0 0.0
  %222 = vmatprep.subr.mxu0 0.0
  %223 = vmatpush1.msra.mxu0 0.0
  %224 = vmatprep.subr.mxu0 0.0
  %225 = vmatpush1.msra.mxu0 0.0
  %226 = vmatprep.subr.mxu0 0.0
  %227 = vmatpush1.msra.mxu0 0.0
  %228 = vmatprep.subr.mxu0 0.0
  %229 = vmatpush1.msra.mxu0 0.0
  %230 = vmatprep.subr.mxu0 0.0
  %231 = vmatpush1.msra.mxu0 0.0
  %232 = vmatprep.subr.mxu0 0.0
  %233 = vmatpush1.msra.mxu0 0.0
  %234 = vmatprep.subr.mxu0 0.0
  %235 = vmatpush1.msra.mxu0 0.0
  %236 = vmatprep.subr.mxu0 0.0
  %237 = vmatpush1.msra.mxu0 0.0
  %238 = vmatprep.subr.mxu0 0.0
  %239 = vmatpush1.msra.mxu0 0.0
  %240 = vmatprep.subr.mxu0 0.0
  %241 = vmatpush1.msra.mxu0 0.0
  %242 = vmatprep.subr.mxu0 0.0
  %243 = vmatpush1.msra.mxu0 0.0
  %244 = vmatprep.subr.mxu0 0.0
  %245 = vmatpush1.msra.mxu0 0.0
  %246 = vmatprep.subr.mxu0 0.0
  %247 = vmatpush1.msra.mxu0 0.0
  %248 = vmatprep.subr.mxu0 0.0
  %249 = vmatpush1.msra.mxu0 0.0
  %250 = vmatprep.subr.mxu0 0.0
  %251 = vmatpush1.msra.mxu0 0.0
  %252 = vmatprep.subr.mxu0 0.0
  %253 = vmatpush1.msra.mxu0 0.0
  %254 = vmatprep.subr.mxu0 0.0
  %255 = vmatpush1.msra.mxu0 0.0
  %256 = vmatprep.subr.mxu0 0.0
  %257 = vmatpush1.msra.mxu0 0.0
  %258 = vmatprep.subr.mxu0 0.0
  %259 = vmatpush1.msra.mxu0 0.0
  %260 = vmatprep.subr.mxu0 0.0
  %261 = vmatpush1.msra.mxu0 0.0
  %262 = vmatprep.subr.mxu0 0.0
  %263 = vmatpush1.msra.mxu0 0.0
  %264 = vmatprep.mubr.f32.mxu0 0.0
  %265 = vmatmul.mubr.f32.gmra.mrb[0].mxu0 %v198
  %v266 = vpop.f32.mrb[0].mxu0
  %v267 = vadd.f32 0.0, %v266
  %v268 = vpop.f32.mrb[0].mxu0
  %269 = vdwg.mxu0
  %v271 = vsel %vm50, %v37, 0
  %273 = vmatprep.subr.mxu0 0.0
  %274 = vmatpush1.msra.mxu0 %v45
  %275 = vmatprep.subr.mxu0 0.0
  %276 = vmatpush1.msra.mxu0 0.0
  %277 = vmatprep.subr.mxu0 0.0
  %278 = vmatpush1.msra.mxu0 0.0
  %279 = vmatprep.subr.mxu0 0.0
  %280 = vmatpush1.msra.mxu0 0.0
  %281 = vmatprep.subr.mxu0 0.0
  %282 = vmatpush1.msra.mxu0 0.0
  %283 = vmatprep.subr.mxu0 0.0
  %284 = vmatpush1.msra.mxu0 0.0
  %285 = vmatprep.subr.mxu0 0.0
  %286 = vmatpush1.msra.mxu0 0.0
  %287 = vmatprep.subr.mxu0 0.0
  %288 = vmatpush1.msra.mxu0 0.0
  %289 = vmatprep.subr.mxu0 0.0
  %290 = vmatpush1.msra.mxu0 0.0
  %291 = vmatprep.subr.mxu0 0.0
  %292 = vmatpush1.msra.mxu0 0.0
  %293 = vmatprep.subr.mxu0 0.0
  %294 = vmatpush1.msra.mxu0 0.0
  %295 = vmatprep.subr.mxu0 0.0
  %296 = vmatpush1.msra.mxu0 0.0
  %297 = vmatprep.subr.mxu0 0.0
  %298 = vmatpush1.msra.mxu0 0.0
  %299 = vmatprep.subr.mxu0 0.0
  %300 = vmatpush1.msra.mxu0 0.0
  %301 = vmatprep.subr.mxu0 0.0
  %302 = vmatpush1.msra.mxu0 0.0
  %303 = vmatprep.subr.mxu0 0.0
  %304 = vmatpush1.msra.mxu0 0.0
  %305 = vmatprep.subr.mxu0 0.0
  %306 = vmatpush1.msra.mxu0 0.0
  %307 = vmatprep.subr.mxu0 0.0
  %308 = vmatpush1.msra.mxu0 0.0
  %309 = vmatprep.subr.mxu0 0.0
  %310 = vmatpush1.msra.mxu0 0.0
  %311 = vmatprep.subr.mxu0 0.0
  %312 = vmatpush1.msra.mxu0 0.0
  %313 = vmatprep.subr.mxu0 0.0
  %314 = vmatpush1.msra.mxu0 0.0
  %315 = vmatprep.subr.mxu0 0.0
  %316 = vmatpush1.msra.mxu0 0.0
  %317 = vmatprep.subr.mxu0 0.0
  %318 = vmatpush1.msra.mxu0 0.0
  %319 = vmatprep.subr.mxu0 0.0
  %320 = vmatpush1.msra.mxu0 0.0
  %321 = vmatprep.subr.mxu0 0.0
  %322 = vmatpush1.msra.mxu0 0.0
  %323 = vmatprep.subr.mxu0 0.0
  %324 = vmatpush1.msra.mxu0 0.0
  %325 = vmatprep.subr.mxu0 0.0
  %326 = vmatpush1.msra.mxu0 0.0
  %327 = vmatprep.subr.mxu0 0.0
  %328 = vmatpush1.msra.mxu0 0.0
  %329 = vmatprep.subr.mxu0 0.0
  %330 = vmatpush1.msra.mxu0 0.0
  %331 = vmatprep.subr.mxu0 0.0
  %332 = vmatpush1.msra.mxu0 0.0
  %333 = vmatprep.subr.mxu0 0.0
  %334 = vmatpush1.msra.mxu0 0.0
  %335 = vmatprep.subr.mxu0 0.0
  %336 = vmatpush1.msra.mxu0 0.0
  %337 = vmatprep.mubr.f32.mxu0 0.0
  %338 = vmatmul.mubr.f32.gmra.mrb[0].mxu0 %v271
  %v339 = vpop.f32.mrb[0].mxu0
  %v340 = vadd.f32 0.0, %v339
  %v341 = vpop.f32.mrb[0].mxu0
  %342 = vdwg.mxu0
  %v344 = vsel %vm50, %v38, 0
  %346 = vmatprep.subr.mxu0 0.0
  %347 = vmatpush1.msra.mxu0 %v46
  %348 = vmatprep.subr.mxu0 0.0
  %349 = vmatpush1.msra.mxu0 0.0
  %350 = vmatprep.subr.mxu0 0.0
  %351 = vmatpush1.msra.mxu0 0.0
  %352 = vmatprep.subr.mxu0 0.0
  %353 = vmatpush1.msra.mxu0 0.0
  %354 = vmatprep.subr.mxu0 0.0
  %355 = vmatpush1.msra.mxu0 0.0
  %356 = vmatprep.subr.mxu0 0.0
  %357 = vmatpush1.msra.mxu0 0.0
  %358 = vmatprep.subr.mxu0 0.0
  %359 = vmatpush1.msra.mxu0 0.0
  %360 = vmatprep.subr.mxu0 0.0
  %361 = vmatpush1.msra.mxu0 0.0
  %362 = vmatprep.subr.mxu0 0.0
  %363 = vmatpush1.msra.mxu0 0.0
  %364 = vmatprep.subr.mxu0 0.0
  %365 = vmatpush1.msra.mxu0 0.0
  %366 = vmatprep.subr.mxu0 0.0
  %367 = vmatpush1.msra.mxu0 0.0
  %368 = vmatprep.subr.mxu0 0.0
  %369 = vmatpush1.msra.mxu0 0.0
  %370 = vmatprep.subr.mxu0 0.0
  %371 = vmatpush1.msra.mxu0 0.0
  %372 = vmatprep.subr.mxu0 0.0
  %373 = vmatpush1.msra.mxu0 0.0
  %374 = vmatprep.subr.mxu0 0.0
  %375 = vmatpush1.msra.mxu0 0.0
  %376 = vmatprep.subr.mxu0 0.0
  %377 = vmatpush1.msra.mxu0 0.0
  %378 = vmatprep.subr.mxu0 0.0
  %379 = vmatpush1.msra.mxu0 0.0
  %380 = vmatprep.subr.mxu0 0.0
  %381 = vmatpush1.msra.mxu0 0.0
  %382 = vmatprep.subr.mxu0 0.0
  %383 = vmatpush1.msra.mxu0 0.0
  %384 = vmatprep.subr.mxu0 0.0
  %385 = vmatpush1.msra.mxu0 0.0
  %386 = vmatprep.subr.mxu0 0.0
  %387 = vmatpush1.msra.mxu0 0.0
  %388 = vmatprep.subr.mxu0 0.0
  %389 = vmatpush1.msra.mxu0 0.0
  %390 = vmatprep.subr.mxu0 0.0
  %391 = vmatpush1.msra.mxu0 0.0
  %392 = vmatprep.subr.mxu0 0.0
  %393 = vmatpush1.msra.mxu0 0.0
  %394 = vmatprep.subr.mxu0 0.0
  %395 = vmatpush1.msra.mxu0 0.0
  %396 = vmatprep.subr.mxu0 0.0
  %397 = vmatpush1.msra.mxu0 0.0
  %398 = vmatprep.subr.mxu0 0.0
  %399 = vmatpush1.msra.mxu0 0.0
  %400 = vmatprep.subr.mxu0 0.0
  %401 = vmatpush1.msra.mxu0 0.0
  %402 = vmatprep.subr.mxu0 0.0
  %403 = vmatpush1.msra.mxu0 0.0
  %404 = vmatprep.subr.mxu0 0.0
  %405 = vmatpush1.msra.mxu0 0.0
  %406 = vmatprep.subr.mxu0 0.0
  %407 = vmatpush1.msra.mxu0 0.0
  %408 = vmatprep.subr.mxu0 0.0
  %409 = vmatpush1.msra.mxu0 0.0
  %410 = vmatprep.mubr.f32.mxu0 0.0
  %411 = vmatmul.mubr.f32.gmra.mrb[0].mxu0 %v344
  %v412 = vpop.f32.mrb[0].mxu0
  %v413 = vadd.f32 0.0, %v412
  %v414 = vpop.f32.mrb[0].mxu0
  %415 = vdwg.mxu0
  %v417 = vsel %vm50, %v39, 0
  %419 = vmatprep.subr.mxu0 0.0
  %420 = vmatpush1.msra.mxu0 %v47
  %421 = vmatprep.subr.mxu0 0.0
  %422 = vmatpush1.msra.mxu0 0.0
  %423 = vmatprep.subr.mxu0 0.0
  %424 = vmatpush1.msra.mxu0 0.0
  %425 = vmatprep.subr.mxu0 0.0
  %426 = vmatpush1.msra.mxu0 0.0
  %427 = vmatprep.subr.mxu0 0.0
  %428 = vmatpush1.msra.mxu0 0.0
  %429 = vmatprep.subr.mxu0 0.0
  %430 = vmatpush1.msra.mxu0 0.0
  %431 = vmatprep.subr.mxu0 0.0
  %432 = vmatpush1.msra.mxu0 0.0
  %433 = vmatprep.subr.mxu0 0.0
  %434 = vmatpush1.msra.mxu0 0.0
  %435 = vmatprep.subr.mxu0 0.0
  %436 = vmatpush1.msra.mxu0 0.0
  %437 = vmatprep.subr.mxu0 0.0
  %438 = vmatpush1.msra.mxu0 0.0
  %439 = vmatprep.subr.mxu0 0.0
  %440 = vmatpush1.msra.mxu0 0.0
  %441 = vmatprep.subr.mxu0 0.0
  %442 = vmatpush1.msra.mxu0 0.0
  %443 = vmatprep.subr.mxu0 0.0
  %444 = vmatpush1.msra.mxu0 0.0
  %445 = vmatprep.subr.mxu0 0.0
  %446 = vmatpush1.msra.mxu0 0.0
  %447 = vmatprep.subr.mxu0 0.0
  %448 = vmatpush1.msra.mxu0 0.0
  %449 = vmatprep.subr.mxu0 0.0
  %450 = vmatpush1.msra.mxu0 0.0
  %451 = vmatprep.subr.mxu0 0.0
  %452 = vmatpush1.msra.mxu0 0.0
  %453 = vmatprep.subr.mxu0 0.0
  %454 = vmatpush1.msra.mxu0 0.0
  %455 = vmatprep.subr.mxu0 0.0
  %456 = vmatpush1.msra.mxu0 0.0
  %457 = vmatprep.subr.mxu0 0.0
  %458 = vmatpush1.msra.mxu0 0.0
  %459 = vmatprep.subr.mxu0 0.0
  %460 = vmatpush1.msra.mxu0 0.0
  %461 = vmatprep.subr.mxu0 0.0
  %462 = vmatpush1.msra.mxu0 0.0
  %463 = vmatprep.subr.mxu0 0.0
  %464 = vmatpush1.msra.mxu0 0.0
  %465 = vmatprep.subr.mxu0 0.0
  %466 = vmatpush1.msra.mxu0 0.0
  %467 = vmatprep.subr.mxu0 0.0
  %468 = vmatpush1.msra.mxu0 0.0
  %469 = vmatprep.subr.mxu0 0.0
  %470 = vmatpush1.msra.mxu0 0.0
  %471 = vmatprep.subr.mxu0 0.0
  %472 = vmatpush1.msra.mxu0 0.0
  %473 = vmatprep.subr.mxu0 0.0
  %474 = vmatpush1.msra.mxu0 0.0
  %475 = vmatprep.subr.mxu0 0.0
  %476 = vmatpush1.msra.mxu0 0.0
  %477 = vmatprep.subr.mxu0 0.0
  %478 = vmatpush1.msra.mxu0 0.0
  %479 = vmatprep.subr.mxu0 0.0
  %480 = vmatpush1.msra.mxu0 0.0
  %481 = vmatprep.subr.mxu0 0.0
  %482 = vmatpush1.msra.mxu0 0.0
  %483 = vmatprep.mubr.f32.mxu0 0.0
  %484 = vmatmul.mubr.f32.gmra.mrb[0].mxu0 %v417
  %v485 = vpop.f32.mrb[0].mxu0
  %v486 = vadd.f32 0.0, %v485
  %v487 = vpop.f32.mrb[0].mxu0
  %488 = vdwg.mxu0
  %v490 = vsel %vm50, %v40, 0
  %492 = vmatprep.subr.mxu0 0.0
  %493 = vmatpush1.msra.mxu0 %v48
  %494 = vmatprep.subr.mxu0 0.0
  %495 = vmatpush1.msra.mxu0 0.0
  %496 = vmatprep.subr.mxu0 0.0
  %497 = vmatpush1.msra.mxu0 0.0
  %498 = vmatprep.subr.mxu0 0.0
  %499 = vmatpush1.msra.mxu0 0.0
  %500 = vmatprep.subr.mxu0 0.0
  %501 = vmatpush1.msra.mxu0 0.0
  %502 = vmatprep.subr.mxu0 0.0
  %503 = vmatpush1.msra.mxu0 0.0
  %504 = vmatprep.subr.mxu0 0.0
  %505 = vmatpush1.msra.mxu0 0.0
  %506 = vmatprep.subr.mxu0 0.0
  %507 = vmatpush1.msra.mxu0 0.0
  %508 = vmatprep.subr.mxu0 0.0
  %509 = vmatpush1.msra.mxu0 0.0
  %510 = vmatprep.subr.mxu0 0.0
  %511 = vmatpush1.msra.mxu0 0.0
  %512 = vmatprep.subr.mxu0 0.0
  %513 = vmatpush1.msra.mxu0 0.0
  %514 = vmatprep.subr.mxu0 0.0
  %515 = vmatpush1.msra.mxu0 0.0
  %516 = vmatprep.subr.mxu0 0.0
  %517 = vmatpush1.msra.mxu0 0.0
  %518 = vmatprep.subr.mxu0 0.0
  %519 = vmatpush1.msra.mxu0 0.0
  %520 = vmatprep.subr.mxu0 0.0
  %521 = vmatpush1.msra.mxu0 0.0
  %522 = vmatprep.subr.mxu0 0.0
  %523 = vmatpush1.msra.mxu0 0.0
  %524 = vmatprep.subr.mxu0 0.0
  %525 = vmatpush1.msra.mxu0 0.0
  %526 = vmatprep.subr.mxu0 0.0
  %527 = vmatpush1.msra.mxu0 0.0
  %528 = vmatprep.subr.mxu0 0.0
  %529 = vmatpush1.msra.mxu0 0.0
  %530 = vmatprep.subr.mxu0 0.0
  %531 = vmatpush1.msra.mxu0 0.0
  %532 = vmatprep.subr.mxu0 0.0
  %533 = vmatpush1.msra.mxu0 0.0
  %534 = vmatprep.subr.mxu0 0.0
  %535 = vmatpush1.msra.mxu0 0.0
  %536 = vmatprep.subr.mxu0 0.0
  %537 = vmatpush1.msra.mxu0 0.0
  %538 = vmatprep.subr.mxu0 0.0
  %539 = vmatpush1.msra.mxu0 0.0
  %540 = vmatprep.subr.mxu0 0.0
  %541 = vmatpush1.msra.mxu0 0.0
  %542 = vmatprep.subr.mxu0 0.0
  %543 = vmatpush1.msra.mxu0 0.0
  %544 = vmatprep.subr.mxu0 0.0
  %545 = vmatpush1.msra.mxu0 0.0
  %546 = vmatprep.subr.mxu0 0.0
  %547 = vmatpush1.msra.mxu0 0.0
  %548 = vmatprep.subr.mxu0 0.0
  %549 = vmatpush1.msra.mxu0 0.0
  %550 = vmatprep.subr.mxu0 0.0
  %551 = vmatpush1.msra.mxu0 0.0
  %552 = vmatprep.subr.mxu0 0.0
  %553 = vmatpush1.msra.mxu0 0.0
  %554 = vmatprep.subr.mxu0 0.0
  %555 = vmatpush1.msra.mxu0 0.0
  %556 = vmatprep.mubr.f32.mxu0 0.0
  %557 = vmatmul.mubr.f32.gmra.mrb[0].mxu0 %v490
  %v558 = vpop.f32.mrb[0].mxu0
  %v559 = vadd.f32 0.0, %v558
  %v560 = vpop.f32.mrb[0].mxu0
  %561 = vdwg.mxu0
  %v563 = vsel %vm50, %v41, 0
  %565 = vmatprep.subr.mxu0 0.0
  %566 = vmatpush1.msra.mxu0 %v49
  %567 = vmatprep.subr.mxu0 0.0
  %568 = vmatpush1.msra.mxu0 0.0
  %569 = vmatprep.subr.mxu0 0.0
  %570 = vmatpush1.msra.mxu0 0.0
  %571 = vmatprep.subr.mxu0 0.0
  %572 = vmatpush1.msra.mxu0 0.0
  %573 = vmatprep.subr.mxu0 0.0
  %574 = vmatpush1.msra.mxu0 0.0
  %575 = vmatprep.subr.mxu0 0.0
  %576 = vmatpush1.msra.mxu0 0.0
  %577 = vmatprep.subr.mxu0 0.0
  %578 = vmatpush1.msra.mxu0 0.0
  %579 = vmatprep.subr.mxu0 0.0
  %580 = vmatpush1.msra.mxu0 0.0
  %581 = vmatprep.subr.mxu0 0.0
  %582 = vmatpush1.msra.mxu0 0.0
  %583 = vmatprep.subr.mxu0 0.0
  %584 = vmatpush1.msra.mxu0 0.0
  %585 = vmatprep.subr.mxu0 0.0
  %586 = vmatpush1.msra.mxu0 0.0
  %587 = vmatprep.subr.mxu0 0.0
  %588 = vmatpush1.msra.mxu0 0.0
  %589 = vmatprep.subr.mxu0 0.0
  %590 = vmatpush1.msra.mxu0 0.0
  %591 = vmatprep.subr.mxu0 0.0
  %592 = vmatpush1.msra.mxu0 0.0
  %593 = vmatprep.subr.mxu0 0.0
  %594 = vmatpush1.msra.mxu0 0.0
  %595 = vmatprep.subr.mxu0 0.0
  %596 = vmatpush1.msra.mxu0 0.0
  %597 = vmatprep.subr.mxu0 0.0
  %598 = vmatpush1.msra.mxu0 0.0
  %599 = vmatprep.subr.mxu0 0.0
  %600 = vmatpush1.msra.mxu0 0.0
  %601 = vmatprep.subr.mxu0 0.0
  %602 = vmatpush1.msra.mxu0 0.0
  %603 = vmatprep.subr.mxu0 0.0
  %604 = vmatpush1.msra.mxu0 0.0
  %605 = vmatprep.subr.mxu0 0.0
  %606 = vmatpush1.msra.mxu0 0.0
  %607 = vmatprep.subr.mxu0 0.0
  %608 = vmatpush1.msra.mxu0 0.0
  %609 = vmatprep.subr.mxu0 0.0
  %610 = vmatpush1.msra.mxu0 0.0
  %611 = vmatprep.subr.mxu0 0.0
  %612 = vmatpush1.msra.mxu0 0.0
  %613 = vmatprep.subr.mxu0 0.0
  %614 = vmatpush1.msra.mxu0 0.0
  %615 = vmatprep.subr.mxu0 0.0
  %616 = vmatpush1.msra.mxu0 0.0
  %617 = vmatprep.subr.mxu0 0.0
  %618 = vmatpush1.msra.mxu0 0.0
  %619 = vmatprep.subr.mxu0 0.0
  %620 = vmatpush1.msra.mxu0 0.0
  %621 = vmatprep.subr.mxu0 0.0
  %622 = vmatpush1.msra.mxu0 0.0
  %623 = vmatprep.subr.mxu0 0.0
  %624 = vmatpush1.msra.mxu0 0.0
  %625 = vmatprep.subr.mxu0 0.0
  %626 = vmatpush1.msra.mxu0 0.0
  %627 = vmatprep.subr.mxu0 0.0
  %628 = vmatpush1.msra.mxu0 0.0
  %629 = vmatprep.mubr.f32.mxu0 0.0
  %630 = vmatmul.mubr.f32.gmra.mrb[0].mxu0 %v563
  %v631 = vpop.f32.mrb[0].mxu0
  %v632 = vadd.f32 0.0, %v631
  %v633 = vpop.f32.mrb[0].mxu0
  %634 = vdwg.mxu0
  %v635 = vadd.f32 %v26, %v121
  %v636 = vadd.f32 %v27, %v194
  %v637 = vadd.f32 %v28, %v267
  %v638 = vadd.f32 %v29, %v340
  %v639 = vadd.f32 %v30, %v413
  %v640 = vadd.f32 %v31, %v486
  %v641 = vadd.f32 %v32, %v559
  %v642 = vadd.f32 %v33, %v632
  %643 = vst [vmem:[#allocation2] sm:$0x1] %v635
  %644 = vst [vmem:[#allocation2 + $0x1] sm:$0x1] %v636
  %645 = vst [vmem:[#allocation2 + $0x2] sm:$0x1] %v637
  %646 = vst [vmem:[#allocation2 + $0x3] sm:$0x1] %v638
  %647 = vst [vmem:[#allocation2 + $0x4] sm:$0x1] %v639
  %648 = vst [vmem:[#allocation2 + $0x5] sm:$0x1] %v640
  %649 = vst [vmem:[#allocation2 + $0x6] sm:$0x1] %v641
  %650 = vst [vmem:[#allocation2 + $0x7] sm:$0x1] %v642
  // Predicated region
  $region18: #{mean_pooling.1} parent=0 // pred_check
    %p651 = pneg %p14
  $region19: #{mean_pooling.1} parent=0 // pred_check_branch
    %653 = sbr.rel (%p651) target = $region21
  $region20: #{mean_pooling.1} parent=0 // pred_region
    %v654 = vld [vmem:[#allocation2] sm:$0x1]
    %v655 = vld [vmem:[#allocation2 + $0x1] sm:$0x1]
    %v656 = vld [vmem:[#allocation2 + $0x2] sm:$0x1]
    %v657 = vld [vmem:[#allocation2 + $0x3] sm:$0x1]
    %v658 = vld [vmem:[#allocation2 + $0x4] sm:$0x1]
    %v659 = vld [vmem:[#allocation2 + $0x5] sm:$0x1]
    %v660 = vld [vmem:[#allocation2 + $0x6] sm:$0x1]
    %v661 = vld [vmem:[#allocation2 + $0x7] sm:$0x1]
    %v662 = vld [vmem:[%s2] sm:$0x1]
    %v663 = vld [vmem:[%s2 + $0x1] sm:$0x1]
    %v664 = vld [vmem:[%s2 + $0x2] sm:$0x1]
    %v665 = vld [vmem:[%s2 + $0x3] sm:$0x1]
    %v666 = vld [vmem:[%s2 + $0x4] sm:$0x1]
    %v667 = vld [vmem:[%s2 + $0x5] sm:$0x1]
    %v668 = vld [vmem:[%s2 + $0x6] sm:$0x1]
    %v669 = vld [vmem:[%s2 + $0x7] sm:$0x1]
    %671 = vset.pattern.permute.xlu0 0
    %672 = vperm.xlu0 %671, %v662
    %v673 = vpop.permute.xlu0 %672
    %v675 = vlaneseq
    %v676 = vshrl.u32 %v675, 7
    %v677 = vsub.s32 0, %v676
    %v678 = vrot.slane %v673, %v677
    %680 = vset.pattern.permute.xlu0 0
    %681 = vperm.xlu0 %680, %v663
    %v682 = vpop.permute.xlu0 %681
    %v684 = vlaneseq
    %v685 = vshrl.u32 %v684, 7
    %v686 = vsub.s32 0, %v685
    %v687 = vrot.slane %v682, %v686
    %689 = vset.pattern.permute.xlu0 0
    %690 = vperm.xlu0 %689, %v664
    %v691 = vpop.permute.xlu0 %690
    %v693 = vlaneseq
    %v694 = vshrl.u32 %v693, 7
    %v695 = vsub.s32 0, %v694
    %v696 = vrot.slane %v691, %v695
    %698 = vset.pattern.permute.xlu0 0
    %699 = vperm.xlu0 %698, %v665
    %v700 = vpop.permute.xlu0 %699
    %v702 = vlaneseq
    %v703 = vshrl.u32 %v702, 7
    %v704 = vsub.s32 0, %v703
    %v705 = vrot.slane %v700, %v704
    %707 = vset.pattern.permute.xlu0 0
    %708 = vperm.xlu0 %707, %v666
    %v709 = vpop.permute.xlu0 %708
    %v711 = vlaneseq
    %v712 = vshrl.u32 %v711, 7
    %v713 = vsub.s32 0, %v712
    %v714 = vrot.slane %v709, %v713
    %716 = vset.pattern.permute.xlu0 0
    %717 = vperm.xlu0 %716, %v667
    %v718 = vpop.permute.xlu0 %717
    %v720 = vlaneseq
    %v721 = vshrl.u32 %v720, 7
    %v722 = vsub.s32 0, %v721
    %v723 = vrot.slane %v718, %v722
    %725 = vset.pattern.permute.xlu0 0
    %726 = vperm.xlu0 %725, %v668
    %v727 = vpop.permute.xlu0 %726
    %v729 = vlaneseq
    %v730 = vshrl.u32 %v729, 7
    %v731 = vsub.s32 0, %v730
    %v732 = vrot.slane %v727, %v731
    %734 = vset.pattern.permute.xlu0 0
    %735 = vperm.xlu0 %734, %v669
    %v736 = vpop.permute.xlu0 %735
    %v738 = vlaneseq
    %v739 = vshrl.u32 %v738, 7
    %v740 = vsub.s32 0, %v739
    %v741 = vrot.slane %v736, %v740
    %v742 = vmul.f32 %v654, %v678
    %v743 = vmul.f32 %v655, %v687
    %v744 = vmul.f32 %v656, %v696
    %v745 = vmul.f32 %v657, %v705
    %v746 = vmul.f32 %v658, %v714
    %v747 = vmul.f32 %v659, %v723
    %v748 = vmul.f32 %v660, %v732
    %v749 = vmul.f32 %v661, %v741
    %750 = vst [vmem:[%s3] sm:$0x1] %v742
    %751 = vst [vmem:[%s3 + $0x1] sm:$0x1] %v743
    %752 = vst [vmem:[%s3 + $0x2] sm:$0x1] %v744
    %753 = vst [vmem:[%s3 + $0x3] sm:$0x1] %v745
    %754 = vst [vmem:[%s3 + $0x4] sm:$0x1] %v746
    %755 = vst [vmem:[%s3 + $0x5] sm:$0x1] %v747
    %756 = vst [vmem:[%s3 + $0x6] sm:$0x1] %v748
    %757 = vst [vmem:[%s3 + $0x7] sm:$0x1] %v749
  $region21: #{mean_pooling.1} parent=0 // pred_fallthru
    _
  // Predicated region
  $region22: #{mean_pooling.1} parent=0 // pred_check
    _
  $region23: #{mean_pooling.1} parent=0 // pred_check_branch
    %759 = sbr.rel (0) target = $region25
  $region24: #{mean_pooling.1} parent=0 // pred_region
    _
  $region25: #{mean_pooling.1} parent=0 // pred_fallthru
    _
  // Predicated region
  $region26: #{mean_pooling.1} parent=0 // pred_check
    _
  $region27: #{mean_pooling.1} parent=0 // pred_check_branch
    %761 = sbr.rel (0) target = $region29
  $region28: #{mean_pooling.1} parent=0 // pred_region
    _
  $region29: #{mean_pooling.1} parent=0 // pred_fallthru
    _

</llo_original>
